<compile_context>
chip_gen: v5e
topology: v5e:2x2
jax: 0.10.0
libtpu: 0.0.40
codegen_flags: <defaults>
</compile_context>

<pallas_src>
import math
import numpy as np
import jax
import jax.numpy as jnp
from jax.experimental import pallas as pl
from jax.experimental.pallas import tpu as pltpu  # noqa: F401  (kept for TPU-specific extensions)


def gcn_fused_kernel(adj_ref, s1_ref, b1_ref, w2_ref, b2_ref, out_ref):
    """Fused 2-layer GCN: out = adj @ relu(adj @ support1 + b1) @ W2 + b2."""
    adj = adj_ref[...]                                             # (N, N) f32, VMEM-resident

    # ---- layer 1: h1 = relu(adj @ support1 + b1); dropout = identity (eval mode) ----
    h1 = jnp.maximum(
        jnp.dot(adj, s1_ref[...], preferred_element_type=jnp.float32) + b1_ref[...],
        0.0)

    # ---- layer 2: out = adj @ (h1 @ W2) + b2 ----
    s2 = jnp.dot(h1, w2_ref[...], preferred_element_type=jnp.float32)
    out_ref[...] = (jnp.dot(adj, s2, preferred_element_type=jnp.float32)
                    + b2_ref[...]).astype(out_ref.dtype)


def gcn_forward(adj, w1, b1, w2, b2, x=None):
    """GCN forward. x=None means x is the identity (as in the PyTorch module), which
    lets us skip the x @ W1 matmul entirely. A general x is pre-multiplied in the
    wrapper (hoisted out of the kernel)."""
    n = adj.shape[0]
    d = w1.shape[1]

    # support1 = x @ W1  (x == identity -> support1 == W1; otherwise hoist the matmul)
    support1 = w1 if x is None else jnp.dot(x, w1, preferred_element_type=jnp.float32)

    adj_f = adj.astype(jnp.float32)
    s1_f = support1.astype(jnp.float32)
    w2_f = w2.astype(jnp.float32)
    b1_f = jnp.reshape(b1, (1, d)).astype(jnp.float32)
    b2_f = jnp.reshape(b2, (1, d)).astype(jnp.float32)

    # Conservative VMEM-fit guard for the fused single-block path (inputs + output +
    # in-kernel temporaries, with 3x headroom for layout padding / double buffers).
    vmem_bytes = 4 * (n * n + 2 * n * d + d * d + 2 * d) * 3
    assert vmem_bytes < 16 * 1024 * 1024, (
        "Fused single-block GCN kernel expects the whole problem to fit in VMEM; "
        "add a tiled multi-pass path for larger graphs.")

    # flops: 2 adj-matmuls (2*N*N*D each) + the h1 @ W2 projection (2*N*D*D).
    cost = pl.CostEstimate(
        flops=4 * n * n * d + 2 * n * d * d,
        transcendentals=0,
        bytes_accessed=4 * (n * n + n * d + d * d + 2 * d + n * d),
    )

    out = pl.pallas_call(
        gcn_fused_kernel,
        out_shape=jax.ShapeDtypeStruct((n, d), jnp.float32),
        grid=(1,),
        in_specs=[
            pl.BlockSpec((n, n), lambda i: (0, 0)),   # adj          (full array, VMEM)
            pl.BlockSpec((n, d), lambda i: (0, 0)),   # support1
            pl.BlockSpec((1, d), lambda i: (0, 0)),   # b1
            pl.BlockSpec((d, d), lambda i: (0, 0)),   # W2
            pl.BlockSpec((1, d), lambda i: (0, 0)),   # b2
        ],
        out_specs=pl.BlockSpec((n, d), lambda i: (0, 0)),
        cost_estimate=cost,
    )(adj_f, s1_f, b1_f, w2_f, b2_f)

    return out


def row_normalize(mx: np.ndarray) -> np.ndarray:
    """Row-normalize matrix (matches GCN.normalize)."""
    rowsum = np.array(mx.sum(1))
    r_inv = np.power(rowsum, -1.0).flatten()
    r_inv[np.isinf(r_inv)] = 0.0
    r_mat_inv = np.diagflat(r_inv)
    return r_mat_inv.dot(mx)


if __name__ == "__main__":
    voc_size = 32   # number of nodes / vocab size
    emb_dim = 32    # embedding dim

    key = jax.random.PRNGKey(0)
    k_adj, k_w1, k_b1, k_w2, k_b2 = jax.random.split(key, 5)

    # Synthetic symmetric binary adjacency, then GCN.__init__ preprocessing:
    # adj = normalize(adj + I)
    a = (jax.random.uniform(k_adj, (voc_size, voc_size)) > 0.7).astype(np.float32)
    a = np.array(a)
    a = np.maximum(a, a.T)
    adj_np = row_normalize(a + np.eye(voc_size, dtype=np.float32)).astype(np.float32)

    # x = identity (one-hot node features), as in the module -> handled as x=None
    adj = jnp.asarray(adj_np)

    # GraphConvolution parameter init: uniform(-stdv, stdv), stdv = 1/sqrt(out_features)
    stdv1 = 1.0 / math.sqrt(emb_dim)
    w1 = jax.random.uniform(k_w1, (voc_size, emb_dim), jnp.float32, -stdv1, stdv1)
    b1 = jax.random.uniform(k_b1, (emb_dim,), jnp.float32, -stdv1, stdv1)

    stdv2 = 1.0 / math.sqrt(emb_dim)
    w2 = jax.random.uniform(k_w2, (emb_dim, emb_dim), jnp.float32, -stdv2, stdv2)
    b2 = jax.random.uniform(k_b2, (emb_dim,), jnp.float32, -stdv2, stdv2)

    out = gcn_forward(adj, w1, b1, w2, b2)
    out = jax.block_until_ready(out)

    # Pure-JAX f32 reference check.
    x_ref = jnp.eye(voc_size, dtype=jnp.float32)
    h1_ref = jnp.maximum(adj @ (x_ref @ w1) + b1[None, :], 0.0)
    ref = adj @ (h1_ref @ w2) + b2[None, :]
    np.testing.assert_allclose(np.asarray(out), np.asarray(ref), rtol=2e-2, atol=2e-3)

    print("KERNEL_OK")
</pallas_src>

<mosaic_0001>
module attributes {stable_mosaic.version = 11 : i64} {
  func.func @gcn_fused_kernel(%arg0: i32, %arg1: memref<32x32xf32, #tpu.memory_space<vmem>>, %arg2: memref<32x32xf32, #tpu.memory_space<vmem>>, %arg3: memref<1x32xf32, #tpu.memory_space<vmem>>, %arg4: memref<32x32xf32, #tpu.memory_space<vmem>>, %arg5: memref<1x32xf32, #tpu.memory_space<vmem>>, %arg6: memref<32x32xf32, #tpu.memory_space<vmem>>) attributes {dimension_semantics = [#tpu.dimension_semantics<arbitrary>], iteration_bounds = array<i64: 1>, scalar_prefetch = 0 : i64, scratch_operands = 0 : i64, tpu.core_type = #tpu.core_type<tc>, window_params = [{pipeline_mode = #tpu.pipeline_mode<synchronous>, transform_indices = @transform_0, window_bounds = array<i64: 32, 32>}, {pipeline_mode = #tpu.pipeline_mode<synchronous>, transform_indices = @transform_1, window_bounds = array<i64: 32, 32>}, {pipeline_mode = #tpu.pipeline_mode<synchronous>, transform_indices = @transform_2, window_bounds = array<i64: 1, 32>}, {pipeline_mode = #tpu.pipeline_mode<synchronous>, transform_indices = @transform_3, window_bounds = array<i64: 32, 32>}, {pipeline_mode = #tpu.pipeline_mode<synchronous>, transform_indices = @transform_4, window_bounds = array<i64: 1, 32>}, {pipeline_mode = #tpu.pipeline_mode<synchronous>, transform_indices = @transform_5, window_bounds = array<i64: 32, 32>}]} {
    %c0 = arith.constant 0 : index
    %c0_0 = arith.constant 0 : index
    %0 = vector.load %arg1[%c0, %c0_0] : memref<32x32xf32, #tpu.memory_space<vmem>>, vector<32x32xf32>
    %c0_1 = arith.constant 0 : index
    %c0_2 = arith.constant 0 : index
    %1 = vector.load %arg2[%c0_1, %c0_2] : memref<32x32xf32, #tpu.memory_space<vmem>>, vector<32x32xf32>
    %cst = arith.constant dense<0.000000e+00> : vector<32x32xf32>
    %2 = tpu.matmul %0, %1, %cst {dimension_numbers = #tpu.dot_dimension_numbers<[1], [0], [0], [1], [0, 0, 1, 1], [], []>} : vector<32x32xf32>, vector<32x32xf32>, vector<32x32xf32> -> vector<32x32xf32>
    %c0_3 = arith.constant 0 : index
    %c0_4 = arith.constant 0 : index
    %3 = vector.load %arg3[%c0_3, %c0_4] : memref<1x32xf32, #tpu.memory_space<vmem>>, vector<1x32xf32>
    %4 = vector.broadcast %3 : vector<1x32xf32> to vector<32x32xf32>
    %5 = arith.addf %2, %4 : vector<32x32xf32>
    %cst_5 = arith.constant 0.000000e+00 : f32
    %6 = vector.broadcast %cst_5 : f32 to vector<32x32xf32>
    %7 = arith.maximumf %5, %6 : vector<32x32xf32>
    %c0_6 = arith.constant 0 : index
    %c0_7 = arith.constant 0 : index
    %8 = vector.load %arg4[%c0_6, %c0_7] : memref<32x32xf32, #tpu.memory_space<vmem>>, vector<32x32xf32>
    %cst_8 = arith.constant dense<0.000000e+00> : vector<32x32xf32>
    %9 = tpu.matmul %7, %8, %cst_8 {dimension_numbers = #tpu.dot_dimension_numbers<[1], [0], [0], [1], [0, 0, 1, 1], [], []>} : vector<32x32xf32>, vector<32x32xf32>, vector<32x32xf32> -> vector<32x32xf32>
    %cst_9 = arith.constant dense<0.000000e+00> : vector<32x32xf32>
    %10 = tpu.matmul %0, %9, %cst_9 {dimension_numbers = #tpu.dot_dimension_numbers<[1], [0], [0], [1], [0, 0, 1, 1], [], []>} : vector<32x32xf32>, vector<32x32xf32>, vector<32x32xf32> -> vector<32x32xf32>
    %c0_10 = arith.constant 0 : index
    %c0_11 = arith.constant 0 : index
    %11 = vector.load %arg5[%c0_10, %c0_11] : memref<1x32xf32, #tpu.memory_space<vmem>>, vector<1x32xf32>
    %12 = vector.broadcast %11 : vector<1x32xf32> to vector<32x32xf32>
    %13 = arith.addf %10, %12 : vector<32x32xf32>
    %c0_12 = arith.constant 0 : index
    %c0_13 = arith.constant 0 : index
    %14 = vector.load %arg6[%c0_12, %c0_13] : memref<32x32xf32, #tpu.memory_space<vmem>>, vector<32x32xf32>
    tpu.vector_store %arg6[%c0_12, %c0_13], %13 {strides = array<i32>} : memref<32x32xf32, #tpu.memory_space<vmem>>, vector<32x32xf32>,
    return
  }
  func.func @transform_0(%arg0: i32) -> (i32, i32) {
    %c0_i32 = arith.constant 0 : i32
    %c0_i32_0 = arith.constant 0 : i32
    %c0_i32_1 = arith.constant 0 : i32
    return %c0_i32, %c0_i32_0 : i32, i32
  }
  func.func @transform_1(%arg0: i32) -> (i32, i32) {
    %c0_i32 = arith.constant 0 : i32
    %c0_i32_0 = arith.constant 0 : i32
    %c0_i32_1 = arith.constant 0 : i32
    return %c0_i32, %c0_i32_0 : i32, i32
  }
  func.func @transform_2(%arg0: i32) -> (i32, i32) {
    %c0_i32 = arith.constant 0 : i32
    %c0_i32_0 = arith.constant 0 : i32
    %c0_i32_1 = arith.constant 0 : i32
    return %c0_i32, %c0_i32_0 : i32, i32
  }
  func.func @transform_3(%arg0: i32) -> (i32, i32) {
    %c0_i32 = arith.constant 0 : i32
    %c0_i32_0 = arith.constant 0 : i32
    %c0_i32_1 = arith.constant 0 : i32
    return %c0_i32, %c0_i32_0 : i32, i32
  }
  func.func @transform_4(%arg0: i32) -> (i32, i32) {
    %c0_i32 = arith.constant 0 : i32
    %c0_i32_0 = arith.constant 0 : i32
    %c0_i32_1 = arith.constant 0 : i32
    return %c0_i32, %c0_i32_0 : i32, i32
  }
  func.func @transform_5(%arg0: i32) -> (i32, i32) {
    %c0_i32 = arith.constant 0 : i32
    %c0_i32_0 = arith.constant 0 : i32
    %c0_i32_1 = arith.constant 0 : i32
    return %c0_i32, %c0_i32_0 : i32, i32
  }
}

</mosaic_0001>

<llo_original>
// kernel: tpu_custom_call.1
$region0: #{tpu_custom_call.1}
  #allocation0 [shape = 'u32[]', space=smem, size = 0x4, offset = 0x4, fixed_abs, tag = 'smem constant byte address 0x4 - core index']
  #allocation1 [shape = 'u32[72,128]{1,0:T(1,128)}', space=vmem, size = 0x9000, scoped, tag = 'internal scratch']
  %s0 = inlined_call_operand.hbm [shape: f32[32,32], index: 0, kind: input, shape index: {}]
  %s1 = inlined_call_operand.hbm [shape: f32[32,32], index: 1, kind: input, shape index: {}]
  %s2 = inlined_call_operand.vmem [shape: f32[1,32], index: 2, kind: input, shape index: {}]
  %s3 = inlined_call_operand.hbm [shape: f32[32,32], index: 3, kind: input, shape index: {}]
  %s4 = inlined_call_operand.vmem [shape: f32[1,32], index: 4, kind: input, shape index: {}]
  %s5 = inlined_call_operand.hbm [shape: f32[32,32], index: 5, kind: output, shape index: {}]
  %s6 = sld [smem:[#allocation0]]
  $region42: #{tpu_custom_call.1} parent=0
    _
  %s8 = ssub.s32 1, %s6
  %s9 = scalar_select 0, %s8, %s6
  $region1: #{tpu_custom_call.1} parent=0
    #allocation2 [shape = 'u8[16384]{0}', space=vmem, size = 0x4000, scoped, tag = 'input window, operand 0, single buffered']
    #allocation3 [shape = 's32[1]{0}', space=sflag, size = 0x4, scoped, tag = 'scoped memory for tpu_custom_call.1']
    #allocation4 [shape = 's32[1]{0}', space=sflag, size = 0x4, scoped, tag = 'scoped memory for tpu_custom_call.1']
    #allocation5 [shape = 'u8[16384]{0}', space=vmem, size = 0x4000, scoped, tag = 'input window, operand 1, single buffered']
    #allocation6 [shape = 's32[1]{0}', space=sflag, size = 0x4, scoped, tag = 'scoped memory for tpu_custom_call.1']
    #allocation7 [shape = 'u8[16384]{0}', space=vmem, size = 0x4000, scoped, tag = 'input window, operand 3, single buffered']
    #allocation8 [shape = 'u8[16384]{0}', space=vmem, size = 0x4000, scoped, tag = 'output window, operand 0, single buffered']
    %10 = vsyncpa [#allocation3], 0
    %11 = vsyncpa [#allocation6], 0
    %12 = vsyncpa [#allocation4], 0
    // Predicated region
    $region2: #{tpu_custom_call.1} parent=1 // pred_check
      _
    $region3: #{tpu_custom_call.1} parent=1 // pred_check_branch
      %14 = sbr.rel (0) target = $region5
    $region4: #{tpu_custom_call.1} parent=1 // pred_region
      %16 = vsyncadd [#allocation3], 0
      %s17 = sshll.u32 %s0, 4
      %s18 = int_to_ptr.hbm [resolvable:$true] %s17
      %s19 = sshll.u32 [#allocation2], 4
      %s20 = int_to_ptr.vmem [resolvable:$true] %s19
      %25 = dma.hbm_to_vmem [thread:$0]  %s18, 512, %s20, [#allocation3], 128, 128, 8
    $region5: #{tpu_custom_call.1} parent=1 // pred_fallthru
      _
    // Predicated region
    $region6: #{tpu_custom_call.1} parent=1 // pred_check
      _
    $region7: #{tpu_custom_call.1} parent=1 // pred_check_branch
      %27 = sbr.rel (0) target = $region9
    $region8: #{tpu_custom_call.1} parent=1 // pred_region
      %29 = vsyncadd [#allocation6], 0
      %s30 = sshll.u32 %s1, 4
      %s31 = int_to_ptr.hbm [resolvable:$true] %s30
      %s32 = sshll.u32 [#allocation5], 4
      %s33 = int_to_ptr.vmem [resolvable:$true] %s32
      %38 = dma.hbm_to_vmem [thread:$0]  %s31, 512, %s33, [#allocation6], 128, 128, 8
    $region9: #{tpu_custom_call.1} parent=1 // pred_fallthru
      _
    // Predicated region
    $region10: #{tpu_custom_call.1} parent=1 // pred_check
      _
    $region11: #{tpu_custom_call.1} parent=1 // pred_check_branch
      %40 = sbr.rel (0) target = $region13
    $region12: #{tpu_custom_call.1} parent=1 // pred_region
      _
    $region13: #{tpu_custom_call.1} parent=1 // pred_fallthru
      _
    // Predicated region
    $region14: #{tpu_custom_call.1} parent=1 // pred_check
      _
    $region15: #{tpu_custom_call.1} parent=1 // pred_check_branch
      %42 = sbr.rel (0) target = $region17
    $region16: #{tpu_custom_call.1} parent=1 // pred_region
      %44 = vsyncadd [#allocation6], 0
      %s45 = sshll.u32 %s3, 4
      %s46 = int_to_ptr.hbm [resolvable:$true] %s45
      %s47 = sshll.u32 [#allocation7], 4
      %s48 = int_to_ptr.vmem [resolvable:$true] %s47
      %53 = dma.hbm_to_vmem [thread:$0]  %s46, 512, %s48, [#allocation6], 128, 128, 8
    $region17: #{tpu_custom_call.1} parent=1 // pred_fallthru
      _
    // Predicated region
    $region18: #{tpu_custom_call.1} parent=1 // pred_check
      _
    $region19: #{tpu_custom_call.1} parent=1 // pred_check_branch
      %55 = sbr.rel (0) target = $region21
    $region20: #{tpu_custom_call.1} parent=1 // pred_region
      _
    $region21: #{tpu_custom_call.1} parent=1 // pred_fallthru
      _
    // Predicated region
    $region22: #{tpu_custom_call.1} parent=1 // pred_check
      _
    $region23: #{tpu_custom_call.1} parent=1 // pred_check_branch
      %57 = sbr.rel (0) target = $region25
    $region24: #{tpu_custom_call.1} parent=1 // pred_region
      %59 = dma.done [#allocation3], 512
    $region25: #{tpu_custom_call.1} parent=1 // pred_fallthru
      _
    // Predicated region
    $region26: #{tpu_custom_call.1} parent=1 // pred_check
      _
    $region27: #{tpu_custom_call.1} parent=1 // pred_check_branch
      %61 = sbr.rel (0) target = $region29
    $region28: #{tpu_custom_call.1} parent=1 // pred_region
      %63 = dma.done [#allocation6], 512
    $region29: #{tpu_custom_call.1} parent=1 // pred_fallthru
      _
    // Predicated region
    $region30: #{tpu_custom_call.1} parent=1 // pred_check
      _
    $region31: #{tpu_custom_call.1} parent=1 // pred_check_branch
      %65 = sbr.rel (0) target = $region33
    $region32: #{tpu_custom_call.1} parent=1 // pred_region
      %67 = dma.done [#allocation6], 512
    $region33: #{tpu_custom_call.1} parent=1 // pred_fallthru
      _
    %v68 = vld [vmem:[#allocation2] sm:$0xff]
    %v69 = vld [vmem:[#allocation2 + $0x8] sm:$0xff]
    %v70 = vld [vmem:[#allocation2 + $0x10] sm:$0xff]
    %v71 = vld [vmem:[#allocation2 + $0x18] sm:$0xff]
    %v72 = vld [vmem:[#allocation5] sm:$0xff]
    %v73 = vld [vmem:[#allocation5 + $0x8] sm:$0xff]
    %v74 = vld [vmem:[#allocation5 + $0x10] sm:$0xff]
    %v75 = vld [vmem:[#allocation5 + $0x18] sm:$0xff]
    %v76 = vld [vmem:[%s2] sm:$0x1]
    %v78 = vperm.slane %v76, 0
    %vm80 = vcmask 261120
    %v82 = vsel %vm80, %v68, 0
    %v85 = vsel %vm80, %v69, 0
    %v88 = vsel %vm80, %v70, 0
    %v91 = vsel %vm80, %v71, 0
    %93 = vmatpush.msra.mxu0 0.0
    %94 = vmatpush.msra.mxu0 0.0
    %95 = vmatpush.msra.mxu0 0.0
    %96 = vmatpush.msra.mxu0 0.0
    %97 = vmatpush.msra.mxu0 0.0
    %98 = vmatpush.msra.mxu0 0.0
    %99 = vmatpush.msra.mxu0 0.0
    %100 = vmatpush.msra.mxu0 0.0
    %101 = vmatpush.msra.mxu0 0.0
    %102 = vmatpush.msra.mxu0 0.0
    %103 = vmatpush.msra.mxu0 0.0
    %104 = vmatpush.msra.mxu0 0.0
    %105 = vmatpush.msra.mxu0 %v75
    %106 = vmatpush.msra.mxu0 %v74
    %107 = vmatpush.msra.mxu0 %v73
    %108 = vmatpush.msra.mxu0 %v72
    %109 = vmatmul.f32.gmra.mxu0 %v82
    %v110 = vpop.f32.mrf.mxu0
    %v111 = vadd.f32 %v78, %v110
    %112 = vmatmul.f32.gmra.mxu0 %v85
    %v113 = vpop.f32.mrf.mxu0
    %v114 = vadd.f32 %v78, %v113
    %115 = vmatmul.f32.gmra.mxu0 %v88
    %v116 = vpop.f32.mrf.mxu0
    %v117 = vadd.f32 %v78, %v116
    %118 = vmatmul.f32.gmra.mxu0 %v91
    %v119 = vpop.f32.mrf.mxu0
    %v120 = vadd.f32 %v78, %v119
    %121 = vdwg.mxu0
    %v122 = vmax.f32 %v111, 0.0
    %v123 = vmax.f32 %v114, 0.0
    %v124 = vmax.f32 %v117, 0.0
    %v125 = vmax.f32 %v120, 0.0
    %v126 = vld [vmem:[#allocation7] sm:$0xff]
    %v127 = vld [vmem:[#allocation7 + $0x8] sm:$0xff]
    %v128 = vld [vmem:[#allocation7 + $0x10] sm:$0xff]
    %v129 = vld [vmem:[#allocation7 + $0x18] sm:$0xff]
    %v131 = vsel %vm80, %v122, 0
    %v134 = vsel %vm80, %v123, 0
    %v137 = vsel %vm80, %v124, 0
    %v140 = vsel %vm80, %v125, 0
    %142 = vmatpush.msra.mxu0 0.0
    %143 = vmatpush.msra.mxu0 0.0
    %144 = vmatpush.msra.mxu0 0.0
    %145 = vmatpush.msra.mxu0 0.0
    %146 = vmatpush.msra.mxu0 0.0
    %147 = vmatpush.msra.mxu0 0.0
    %148 = vmatpush.msra.mxu0 0.0
    %149 = vmatpush.msra.mxu0 0.0
    %150 = vmatpush.msra.mxu0 0.0
    %151 = vmatpush.msra.mxu0 0.0
    %152 = vmatpush.msra.mxu0 0.0
    %153 = vmatpush.msra.mxu0 0.0
    %154 = vmatpush.msra.mxu0 %v129
    %155 = vmatpush.msra.mxu0 %v128
    %156 = vmatpush.msra.mxu0 %v127
    %157 = vmatpush.msra.mxu0 %v126
    %158 = vmatmul.f32.gmra.mxu0 %v131
    %v159 = vpop.f32.mrf.mxu0
    %v160 = vadd.f32 0.0, %v159
    %161 = vmatmul.f32.gmra.mxu0 %v134
    %v162 = vpop.f32.mrf.mxu0
    %v163 = vadd.f32 0.0, %v162
    %164 = vmatmul.f32.gmra.mxu0 %v137
    %v165 = vpop.f32.mrf.mxu0
    %v166 = vadd.f32 0.0, %v165
    %167 = vmatmul.f32.gmra.mxu0 %v140
    %v168 = vpop.f32.mrf.mxu0
    %v169 = vadd.f32 0.0, %v168
    %170 = vdwg.mxu0
    %v171 = vld [vmem:[%s4] sm:$0x1]
    %v173 = vperm.slane %v171, 0
    %175 = vmatpush.msra.mxu0 0.0
    %176 = vmatpush.msra.mxu0 0.0
    %177 = vmatpush.msra.mxu0 0.0
    %178 = vmatpush.msra.mxu0 0.0
    %179 = vmatpush.msra.mxu0 0.0
    %180 = vmatpush.msra.mxu0 0.0
    %181 = vmatpush.msra.mxu0 0.0
    %182 = vmatpush.msra.mxu0 0.0
    %183 = vmatpush.msra.mxu0 0.0
    %184 = vmatpush.msra.mxu0 0.0
    %185 = vmatpush.msra.mxu0 0.0
    %186 = vmatpush.msra.mxu0 0.0
    %187 = vmatpush.msra.mxu0 %v169
    %188 = vmatpush.msra.mxu0 %v166
    %189 = vmatpush.msra.mxu0 %v163
    %190 = vmatpush.msra.mxu0 %v160
    %191 = vmatmul.f32.gmra.mxu0 %v82
    %v192 = vpop.f32.mrf.mxu0
    %v193 = vadd.f32 %v173, %v192
    %194 = vmatmul.f32.gmra.mxu0 %v85
    %v195 = vpop.f32.mrf.mxu0
    %v196 = vadd.f32 %v173, %v195
    %197 = vmatmul.f32.gmra.mxu0 %v88
    %v198 = vpop.f32.mrf.mxu0
    %v199 = vadd.f32 %v173, %v198
    %200 = vmatmul.f32.gmra.mxu0 %v91
    %v201 = vpop.f32.mrf.mxu0
    %v202 = vadd.f32 %v173, %v201
    %203 = vdwg.mxu0
    %204 = vst.msk [vmem:[#allocation8] sm:$0xff] %vm80, %v193
    %205 = vst.msk [vmem:[#allocation8 + $0x8] sm:$0xff] %vm80, %v196
    %206 = vst.msk [vmem:[#allocation8 + $0x10] sm:$0xff] %vm80, %v199
    %207 = vst.msk [vmem:[#allocation8 + $0x18] sm:$0xff] %vm80, %v202
    // Predicated region
    $region34: #{tpu_custom_call.1} parent=1 // pred_check
      _
    $region35: #{tpu_custom_call.1} parent=1 // pred_check_branch
      %209 = sbr.rel (0) target = $region37
    $region36: #{tpu_custom_call.1} parent=1 // pred_region
      %211 = vsyncadd [#allocation4], 0
      %s212 = sshll.u32 [#allocation8], 4
      %s213 = int_to_ptr.vmem [resolvable:$true] %s212
      %s214 = sshll.u32 %s5, 4
      %s215 = int_to_ptr.hbm [resolvable:$true] %s214
      %220 = dma.vmem_to_hbm [thread:$0]  %s213, 512, %s215, [#allocation4], 128, 128, 8
    $region37: #{tpu_custom_call.1} parent=1 // pred_fallthru
      _
    // Predicated region
    $region38: #{tpu_custom_call.1} parent=1 // pred_check
      _
    $region39: #{tpu_custom_call.1} parent=1 // pred_check_branch
      %222 = sbr.rel (0) target = $region41
    $region40: #{tpu_custom_call.1} parent=1 // pred_region
      %224 = dma.done [#allocation4], 512
    $region41: #{tpu_custom_call.1} parent=1 // pred_fallthru
      _
    %225 = vsyncpa [#allocation3], 1
    %226 = vsyncpa [#allocation6], 1
    %227 = vsyncpa [#allocation4], 1

</llo_original>
